<compile_context>
chip_gen: v7x
topology: tpu7x:2x2x1
jax: 0.10.0
libtpu: 0.0.40
codegen_flags: <defaults>
</compile_context>

<pallas_src>
import jax
import jax.numpy as jnp
from jax.experimental import pallas as pl
from jax.experimental.pallas import tpu as pltpu


def _round_up(x: int, m: int) -> int:
    return pl.cdiv(x, m) * m


def _logits_kernel(h_ref, w_ref, b_ref, o_ref):
    # h_ref: (tm, H)   bf16 activation tile, resident across the inner vocab sweep
    # w_ref: (H, tn)   bf16 vocab-column tile, streamed from HBM per step
    # b_ref: (1, tn)   f32 bias tile, streamed (fully hidden under the weight DMA)
    # o_ref: (tm, tn)  lane-dense raw-logits tile (bf16 default, f32 optional)
    acc = jnp.dot(h_ref[...], w_ref[...], preferred_element_type=jnp.float32)
    o_ref[...] = (acc + b_ref[...]).astype(o_ref.dtype)


def prepare_vocab_head(w_vocab, b_vocab, *, tile_n=1024):
    """One-time parameter prep, hoisted out of the per-call hot path.

    Casts the vocab-projection weight to bf16 and pads weight/bias to the vocab
    tile so the forward/step call never touches the full (H, V) weight just to
    cast/pad it (that XLA op costs a full extra weight round trip per call).
    Returns (w_pad_bf16 (H, V_pad), bias_pad_f32 (1, V_pad), V, tile_n_eff).
    """
    H, V = w_vocab.shape
    tn = min(tile_n, _round_up(V, 128))
    v_pad = _round_up(V, tn)
    w_p = jnp.pad(w_vocab.astype(jnp.bfloat16), ((0, 0), (0, v_pad - V)))
    b_p = jnp.pad(b_vocab.astype(jnp.float32), (0, v_pad - V)).reshape(1, v_pad)
    return w_p, b_p, V, tn


def vocab_projection(hidden, w_p, b_p, vocab_size, tile_n, *, tile_m=1024,
                     out_dtype=jnp.bfloat16):
    """hidden: (M, H) f32/bf16, w_p: (H, V_pad) bf16, b_p: (1, V_pad) f32
    -> (M, vocab_size) raw logits in out_dtype (no softmax)."""
    M, H = hidden.shape
    Hw, v_pad = w_p.shape
    assert H == Hw
    assert b_p.shape == (1, v_pad)
    tn = tile_n
    assert v_pad % tn == 0

    out_bytes = jnp.dtype(out_dtype).itemsize
    m_pad8 = _round_up(M, 8)

    # Full-slab residency: if the whole bf16 activation slab (and its paired
    # double-buffered output tile) fits a modest VMEM budget, collapse the M
    # grid axis so the weight matrix streams from HBM exactly once — the
    # asymptotic lower bound on weight traffic.  Otherwise tile M at tile_m.
    if m_pad8 * H * 2 <= (4 << 20) and 2 * m_pad8 * tn * out_bytes <= (16 << 20):
        tm = m_pad8
    else:
        tm = min(tile_m, m_pad8)
    m_pad = _round_up(M, tm)

    # Activations are small (per-call) — cast/pad here is cheap; the weight
    # cast/pad was hoisted to prepare_vocab_head.
    h_p = jnp.pad(hidden.astype(jnp.bfloat16), ((0, m_pad - M), (0, 0)))

    # Vocab axis innermost -> the activation tile is fetched once per row-tile
    # and stays resident while weight/bias tiles stream.
    grid = (m_pad // tm, v_pad // tn)
    m_tiles = grid[0]

    # Generation-aware VMEM budget: double-buffered hidden/weight/output/bias
    # tiles + slack, capped at ~75% of physical VMEM (64 MiB fallback = v7x).
    tile_bytes = 2 * (tm * H * 2 + H * tn * 2 + tm * tn * out_bytes + tn * 4)
    vmem_cap = 64 << 20
    try:
        vmem_cap = int(getattr(pltpu.get_tpu_info(), "vmem_capacity_bytes", vmem_cap))
    except Exception:
        pass
    vmem_limit = int(min(max(tile_bytes + (8 << 20), 32 << 20), (vmem_cap * 3) // 4))

    cost = pl.CostEstimate(
        flops=2 * m_pad * H * v_pad,
        transcendentals=0,
        bytes_accessed=(m_tiles * H * v_pad * 2        # weight stream (re-read per M tile)
                        + m_pad * H * 2                # activations (resident per M tile)
                        + m_pad * v_pad * out_bytes),  # logits writeback
    )

    out = pl.pallas_call(
        _logits_kernel,
        out_shape=jax.ShapeDtypeStruct((m_pad, v_pad), out_dtype),
        grid_spec=pltpu.PrefetchScalarGridSpec(
            num_scalar_prefetch=0,
            grid=grid,
            in_specs=[
                pl.BlockSpec((tm, H), lambda i, j: (i, 0)),   # activation row tile (resident over j)
                pl.BlockSpec((H, tn), lambda i, j: (0, j)),   # weight column tile (streamed)
                pl.BlockSpec((1, tn), lambda i, j: (0, j)),   # bias tile (streamed, hidden under W)
            ],
            out_specs=pl.BlockSpec((tm, tn), lambda i, j: (i, j)),  # lane-dense output tile
        ),
        compiler_params=pltpu.CompilerParams(
            dimension_semantics=("parallel", "parallel"),
            vmem_limit_bytes=vmem_limit,
        ),
        cost_estimate=cost,
    )(h_p, w_p, b_p)

    return out[:M, :vocab_size]


def seq2seq_forward(token_ids, emb_table, head, *, out_dtype=jnp.bfloat16):
    """token_ids: (B, S) int32 -> raw logits (B, S, V) (no softmax), per step()'s contract."""
    w_p, b_p, vocab_size, tn = head
    B, S = token_ids.shape
    # TODO(synk): fuse this gather into the kernel (scalar-prefetched token ids
    # + manual DMA row gather from the HBM embedding table) to skip the (M, H)
    # HBM round-trip on the large-M prefill/training path; kept as XLA glue.
    hidden = emb_table[token_ids].reshape(B * S, -1)
    logits = vocab_projection(hidden, w_p, b_p, vocab_size, tn, out_dtype=out_dtype)
    return logits.reshape(B, S, vocab_size)


if __name__ == "__main__":
    # Small, deterministic shapes consistent with a seq2seq step():
    # batch=2, seq_len=8, hidden=32, vocab=256
    B, S, H, V = 2, 8, 32, 256

    key = jax.random.PRNGKey(0)
    k_tok, k_emb, k_w, k_b = jax.random.split(key, 4)

    token_ids = jax.random.randint(k_tok, (B, S), 0, V, dtype=jnp.int32)
    emb_table = jax.random.normal(k_emb, (V, H), dtype=jnp.float32) * 0.02
    w_vocab = jax.random.normal(k_w, (H, V), dtype=jnp.float32) * 0.02
    b_vocab = jax.random.normal(k_b, (V,), dtype=jnp.float32) * 0.01

    # One-time parameter prep (weight cast/pad hoisted out of the hot path).
    head = prepare_vocab_head(w_vocab, b_vocab, tile_n=1024)

    # Default (bf16-logits) path.
    logits = jax.block_until_ready(seq2seq_forward(token_ids, emb_table, head))
    assert logits.shape == (B, S, V)
    assert logits.dtype == jnp.bfloat16

    # Reference on the same bf16-rounded inputs (kernel uses f32 accumulation).
    h_ref = emb_table[token_ids].astype(jnp.bfloat16).astype(jnp.float32).reshape(B * S, H)
    w_ref = w_vocab.astype(jnp.bfloat16).astype(jnp.float32)
    ref = (h_ref @ w_ref + b_vocab).reshape(B, S, V)
    assert jnp.allclose(logits.astype(jnp.float32), ref, atol=1e-3, rtol=2e-2)

    # f32-output path of the same kernel (tighter numeric check).
    w_p, b_p, vocab_size, tn = head
    hidden = emb_table[token_ids].reshape(B * S, H)
    logits32 = jax.block_until_ready(
        vocab_projection(hidden, w_p, b_p, vocab_size, tn, out_dtype=jnp.float32)
    )
    assert jnp.allclose(logits32.reshape(B, S, V), ref, atol=1e-5, rtol=1e-3)

    print("KERNEL_OK")
</pallas_src>

<mosaic_0001>
module attributes {stable_mosaic.version = 11 : i64} {
  func.func @_logits_kernel(%arg0: i32, %arg1: i32, %arg2: memref<16x32xbf16, #tpu.memory_space<vmem>>, %arg3: memref<32x256xbf16, #tpu.memory_space<vmem>>, %arg4: memref<1x256xf32, #tpu.memory_space<vmem>>, %arg5: memref<16x256xbf16, #tpu.memory_space<vmem>>) attributes {dimension_semantics = [#tpu.dimension_semantics<parallel>, #tpu.dimension_semantics<parallel>], iteration_bounds = array<i64: 1, 1>, scalar_prefetch = 0 : i64, scratch_operands = 0 : i64, tpu.core_type = #tpu.core_type<tc>, window_params = [{transform_indices = @transform_0, window_bounds = array<i64: 16, 32>}, {transform_indices = @transform_1, window_bounds = array<i64: 32, 256>}, {transform_indices = @transform_2, window_bounds = array<i64: 1, 256>}, {transform_indices = @transform_3, window_bounds = array<i64: 16, 256>}]} {
    %c0 = arith.constant 0 : index
    %c0_0 = arith.constant 0 : index
    %0 = vector.load %arg2[%c0, %c0_0] : memref<16x32xbf16, #tpu.memory_space<vmem>>, vector<16x32xbf16>
    %c0_1 = arith.constant 0 : index
    %c0_2 = arith.constant 0 : index
    %1 = vector.load %arg3[%c0_1, %c0_2] : memref<32x256xbf16, #tpu.memory_space<vmem>>, vector<32x256xbf16>
    %cst = arith.constant dense<0.000000e+00> : vector<16x256xf32>
    %2 = tpu.matmul %0, %1, %cst {dimension_numbers = #tpu.dot_dimension_numbers<[1], [0], [0], [1], [0, 0, 1, 1], [], []>} : vector<16x32xbf16>, vector<32x256xbf16>, vector<16x256xf32> -> vector<16x256xf32>
    %c0_3 = arith.constant 0 : index
    %c0_4 = arith.constant 0 : index
    %3 = vector.load %arg4[%c0_3, %c0_4] : memref<1x256xf32, #tpu.memory_space<vmem>>, vector<1x256xf32>
    %4 = vector.broadcast %3 : vector<1x256xf32> to vector<16x256xf32>
    %5 = arith.addf %2, %4 : vector<16x256xf32>
    %6 = arith.truncf %5 : vector<16x256xf32> to vector<16x256xbf16>
    %c0_5 = arith.constant 0 : index
    %c0_6 = arith.constant 0 : index
    %7 = vector.load %arg5[%c0_5, %c0_6] : memref<16x256xbf16, #tpu.memory_space<vmem>>, vector<16x256xbf16>
    tpu.vector_store %arg5[%c0_5, %c0_6], %6 {strides = array<i32>} : memref<16x256xbf16, #tpu.memory_space<vmem>>, vector<16x256xbf16>,
    return
  }
  func.func @transform_0(%arg0: i32, %arg1: i32) -> (i32, i32) {
    %c0_i32 = arith.constant 0 : i32
    %c0_i32_0 = arith.constant 0 : i32
    return %arg0, %c0_i32 : i32, i32
  }
  func.func @transform_1(%arg0: i32, %arg1: i32) -> (i32, i32) {
    %c0_i32 = arith.constant 0 : i32
    %c0_i32_0 = arith.constant 0 : i32
    return %c0_i32, %arg1 : i32, i32
  }
  func.func @transform_2(%arg0: i32, %arg1: i32) -> (i32, i32) {
    %c0_i32 = arith.constant 0 : i32
    %c0_i32_0 = arith.constant 0 : i32
    return %c0_i32, %arg1 : i32, i32
  }
  func.func @transform_3(%arg0: i32, %arg1: i32) -> (i32, i32) {
    %c0_i32 = arith.constant 0 : i32
    return %arg0, %arg1 : i32, i32
  }
}

</mosaic_0001>

<llo_original>
// kernel: tpu_custom_call.1
$region0: #{tpu_custom_call.1}
  #allocation0 [shape = 'u32[]', space=smem, size = 0x4, offset = 0x4, fixed_abs, tag = 'smem constant byte address 0x4 - core index']
  #allocation1 [shape = 'u32[144,128]{1,0:T(1,128)}', space=vmem, size = 0x12000, scoped, tag = 'internal scratch']
  %s0 = inlined_call_operand.hbm [shape: bf16[16,32], index: 0, kind: input, shape index: {}]
  %s1 = inlined_call_operand.hbm [shape: bf16[32,256], index: 1, kind: input, shape index: {}]
  %s2 = inlined_call_operand.vmem [shape: f32[1,256], index: 2, kind: input, shape index: {}]
  %s3 = inlined_call_operand.hbm [shape: bf16[16,256], index: 3, kind: output, shape index: {}]
  %s4 = sld [smem:[#allocation0]]
  $region30: #{tpu_custom_call.1} parent=0
    _
  %s6 = ssub.s32 1, %s4
  %s7 = scalar_select 0, %s6, %s4
  $region1: #{tpu_custom_call.1} parent=0
    #allocation2 [shape = 'u8[4096]{0}', space=vmem, size = 0x1000, scoped, tag = 'input window, operand 0, single buffered']
    #allocation3 [shape = 's32[1]{0}', space=sflag, size = 0x4, scoped, tag = 'scoped memory for tpu_custom_call.1']
    #allocation4 [shape = 's32[1]{0}', space=sflag, size = 0x4, scoped, tag = 'scoped memory for tpu_custom_call.1']
    #allocation5 [shape = 'u8[16384]{0}', space=vmem, size = 0x4000, scoped, tag = 'input window, operand 1, single buffered']
    #allocation6 [shape = 's32[1]{0}', space=sflag, size = 0x4, scoped, tag = 'scoped memory for tpu_custom_call.1']
    #allocation7 [shape = 'u8[8192]{0}', space=vmem, size = 0x2000, scoped, tag = 'output window, operand 0, single buffered']
    %8 = vsyncpa [#allocation3], 0
    %9 = vsyncpa [#allocation6], 0
    %10 = vsyncpa [#allocation4], 0
    // Predicated region
    $region2: #{tpu_custom_call.1} parent=1 // pred_check
      _
    $region3: #{tpu_custom_call.1} parent=1 // pred_check_branch
      %12 = sbr.rel (0) target = $region5
    $region4: #{tpu_custom_call.1} parent=1 // pred_region
      %s14 = ssub.s32 128, 128
      %15 = vsyncadd [#allocation3], %s14
      %s16 = sshll.u32 [#allocation2], 4
      %s17 = int_to_ptr.vmem [resolvable:$true] %s16
      %22 = dma.hbm_to_vmem [thread:$0]  %s0, 128, %s17, [#allocation3], 64, 64, 4
    $region5: #{tpu_custom_call.1} parent=1 // pred_fallthru
      _
    // Predicated region
    $region6: #{tpu_custom_call.1} parent=1 // pred_check
      _
    $region7: #{tpu_custom_call.1} parent=1 // pred_check_branch
      %24 = sbr.rel (0) target = $region9
    $region8: #{tpu_custom_call.1} parent=1 // pred_region
      %s26 = ssub.s32 512, 512
      %27 = vsyncadd [#allocation6], %s26
      %s28 = sshll.u32 [#allocation5], 4
      %s29 = int_to_ptr.vmem [resolvable:$true] %s28
      %34 = dma.hbm_to_vmem [thread:$0]  %s1, 512, %s29, [#allocation6], 128, 128, 8
    $region9: #{tpu_custom_call.1} parent=1 // pred_fallthru
      _
    // Predicated region
    $region10: #{tpu_custom_call.1} parent=1 // pred_check
      _
    $region11: #{tpu_custom_call.1} parent=1 // pred_check_branch
      %36 = sbr.rel (0) target = $region13
    $region12: #{tpu_custom_call.1} parent=1 // pred_region
      _
    $region13: #{tpu_custom_call.1} parent=1 // pred_fallthru
      _
    // Predicated region
    $region14: #{tpu_custom_call.1} parent=1 // pred_check
      _
    $region15: #{tpu_custom_call.1} parent=1 // pred_check_branch
      %38 = sbr.rel (0) target = $region17
    $region16: #{tpu_custom_call.1} parent=1 // pred_region
      %39 = dma.done [#allocation3], 128
    $region17: #{tpu_custom_call.1} parent=1 // pred_fallthru
      _
    // Predicated region
    $region18: #{tpu_custom_call.1} parent=1 // pred_check
      _
    $region19: #{tpu_custom_call.1} parent=1 // pred_check_branch
      %41 = sbr.rel (0) target = $region21
    $region20: #{tpu_custom_call.1} parent=1 // pred_region
      %42 = dma.done [#allocation6], 512
    $region21: #{tpu_custom_call.1} parent=1 // pred_fallthru
      _
    %v44 = vld [vmem:[#allocation2] sm:$0xf]
    %v45 = vld [vmem:[#allocation2 + $0x4] sm:$0xf]
    %v46 = vld [vmem:[#allocation5] sm:$0xff]
    %v47 = vld [vmem:[#allocation5 + $0x8] sm:$0xff]
    %v48 = vld [vmem:[#allocation5 + $0x10] sm:$0xff]
    %v49 = vld [vmem:[#allocation5 + $0x18] sm:$0xff]
    %v50 = vld [vmem:[%s2] sm:$0x3]
    %v52 = vlaneseq
    %v53 = vshrl.u32 %v52, 7
    %v54 = vsub.s32 0, %v53
    %v55 = vrot.slane %v50, %v54
    %v56 = vlaneseq
    %v57 = vshrl.u32 %v56, 7
    %v58 = vsub.s32 1, %v57
    %v59 = vrot.slane %v50, %v58
    %v64 = vunpack.c.l.b16 %v44
    %v65 = vunpack.c.l.b16 %v45
    %v66 = vpack.c.b16 %v65, %v64
    %v71 = vunpack.c.l.b16 %v46
    %v72 = vunpack.c.h.b16 %v46
    %v73 = vunpack.c.l.b16 %v47
    %v74 = vunpack.c.h.b16 %v47
    %v75 = vunpack.c.l.b16 %v48
    %v76 = vunpack.c.h.b16 %v48
    %v77 = vunpack.c.l.b16 %v49
    %v78 = vunpack.c.h.b16 %v49
    %v79 = vpack.c.b16 %v73, %v71
    %v80 = vpack.c.b16 %v74, %v72
    %v81 = vpack.c.b16 %v77, %v75
    %v82 = vpack.c.b16 %v78, %v76
    %vm87 = vcmask 261120
    %v89 = vsel %vm87, %v66, 0
    %91 = vmatprep.subr.bf16.mxu0 %v80
    %92 = vmatpush1.bf16.msra.mxu0 %v79
    %93 = vmatprep.subr.bf16.mxu0 %v82
    %94 = vmatpush1.bf16.msra.mxu0 %v81
    %95 = vmatprep.subr.bf16.mxu0 0
    %96 = vmatpush1.bf16.msra.mxu0 0
    %97 = vmatprep.subr.bf16.mxu0 0
    %98 = vmatpush1.bf16.msra.mxu0 0
    %99 = vmatprep.subr.bf16.mxu0 0
    %100 = vmatpush1.bf16.msra.mxu0 0
    %101 = vmatprep.subr.bf16.mxu0 0
    %102 = vmatpush1.bf16.msra.mxu0 0
    %103 = vmatprep.subr.bf16.mxu0 0
    %104 = vmatpush1.bf16.msra.mxu0 0
    %105 = vmatprep.subr.bf16.mxu0 0
    %106 = vmatpush1.bf16.msra.mxu0 0
    %107 = vmatprep.subr.bf16.mxu0 0
    %108 = vmatpush1.bf16.msra.mxu0 0
    %109 = vmatprep.subr.bf16.mxu0 0
    %110 = vmatpush1.bf16.msra.mxu0 0
    %111 = vmatprep.subr.bf16.mxu0 0
    %112 = vmatpush1.bf16.msra.mxu0 0
    %113 = vmatprep.subr.bf16.mxu0 0
    %114 = vmatpush1.bf16.msra.mxu0 0
    %115 = vmatprep.subr.bf16.mxu0 0
    %116 = vmatpush1.bf16.msra.mxu0 0
    %117 = vmatprep.subr.bf16.mxu0 0
    %118 = vmatpush1.bf16.msra.mxu0 0
    %119 = vmatprep.subr.bf16.mxu0 0
    %120 = vmatpush1.bf16.msra.mxu0 0
    %121 = vmatprep.subr.bf16.mxu0 0
    %122 = vmatpush1.bf16.msra.mxu0 0
    %123 = vmatprep.mubr.bf16.mxu0 0
    %124 = vmatmul.mubr.bf16.gmra.mrb[0].mxu0 %v89
    %v125 = vpop.f32.mrb[0].mxu0
    %v126 = vadd.f32 %v55, %v125
    %v127 = vpop.f32.mrb[0].mxu0
    %v128 = vadd.f32 %v59, %v127
    %v129 = vpop.f32.mrb[0].mxu0
    %v130 = vadd.f32 %v55, %v129
    %v131 = vpop.f32.mrb[0].mxu0
    %v132 = vadd.f32 %v59, %v131
    %133 = vdwg.mxu0
    %v134 = vpack.c.bf16 %v130, %v126
    %v135 = vpack.c.bf16 %v132, %v128
    %v138 = vunpack.c.l.b16 %v134
    %v139 = vunpack.c.l.b16 %v135
    %v140 = vunpack.c.h.b16 %v134
    %v141 = vunpack.c.h.b16 %v135
    %v142 = vpack.c.b16 %v139, %v138
    %v143 = vpack.c.b16 %v141, %v140
    %146 = vst [vmem:[#allocation7] sm:$0xff] %v142
    %147 = vst [vmem:[#allocation7 + $0x8] sm:$0xff] %v143
    // Predicated region
    $region22: #{tpu_custom_call.1} parent=1 // pred_check
      _
    $region23: #{tpu_custom_call.1} parent=1 // pred_check_branch
      %149 = sbr.rel (0) target = $region25
    $region24: #{tpu_custom_call.1} parent=1 // pred_region
      %s151 = ssub.s32 256, 256
      %152 = vsyncadd [#allocation4], %s151
      %s153 = sshll.u32 [#allocation7], 4
      %s154 = int_to_ptr.vmem [resolvable:$true] %s153
      %159 = dma.vmem_to_hbm [thread:$0]  %s154, 256, %s3, [#allocation4], 128, 128, 8
    $region25: #{tpu_custom_call.1} parent=1 // pred_fallthru
      _
    // Predicated region
    $region26: #{tpu_custom_call.1} parent=1 // pred_check
      _
    $region27: #{tpu_custom_call.1} parent=1 // pred_check_branch
      %161 = sbr.rel (0) target = $region29
    $region28: #{tpu_custom_call.1} parent=1 // pred_region
      %162 = dma.done [#allocation4], 256
    $region29: #{tpu_custom_call.1} parent=1 // pred_fallthru
      _
    %163 = vsyncpa [#allocation3], 1
    %164 = vsyncpa [#allocation6], 1
    %165 = vsyncpa [#allocation4], 1

</llo_original>
